<compile_context>
chip_gen: v6e
topology: v6e:2x2x1
jax: 0.10.0
libtpu: 0.0.40
codegen_flags: <defaults>
</compile_context>

<pallas_src>
import functools

import jax
import jax.numpy as jnp
from jax import lax
from jax.experimental import pallas as pl
from jax.experimental.pallas import tpu as pltpu


def _dice_kernel(out_ref, tgt_ref, inter_ref, denom_ref, inter_acc, denom_acc,
                 *, hw, tm, need_mask):
    j = pl.program_id(1)

    @pl.when(j == 0)
    def _():
        inter_acc[...] = jnp.zeros_like(inter_acc)
        denom_acc[...] = jnp.zeros_like(denom_acc)

    logits = out_ref[...].astype(jnp.float32)    # (C, TM)
    tgt = tgt_ref[...].astype(jnp.float32)       # (C, TM)
    c = logits.shape[0]

    # softmax across the channel (sublane) axis == torch dim=1
    m = jnp.max(logits, axis=0, keepdims=True)
    e = jnp.exp(logits - m)
    inv = 1.0 / jnp.sum(e, axis=0, keepdims=True)   # one divide per column
    p = e * inv

    if need_mask:
        # tail block: zero out lanes beyond HW (garbage columns -> 0 contribution)
        lane = lax.broadcasted_iota(jnp.int32, (c, tm), 1)
        valid = (j * tm + lane) < hw
        p = jnp.where(valid, p, 0.0)
        tgt = jnp.where(valid, tgt, 0.0)

    # lane-folded partial sums into (C, 128) accumulators
    folds = tm // 128
    inter_acc[...] += jnp.sum((p * tgt).reshape(c, folds, 128), axis=1)
    denom_acc[...] += jnp.sum((p + tgt).reshape(c, folds, 128), axis=1)

    @pl.when(j == pl.num_programs(1) - 1)
    def _():
        inter_ref[...] = jnp.sum(inter_acc[...], axis=1, keepdims=True)  # (C, 1)
        denom_ref[...] = jnp.sum(denom_acc[...], axis=1, keepdims=True)  # (C, 1)


def dice_loss(output, target, *, tm=None):
    assert output.shape == target.shape, "'input' and 'target' must have the same shape"
    N, C = output.shape[0], output.shape[1]
    hw = 1
    for d in output.shape[2:]:
        hw *= d

    # Free views: keep NCHW layout, just collapse spatial dims.
    out3 = output.reshape(N, C, hw)
    tgt3 = target.reshape(N, C, hw)

    # Pick a lane tile: largest multiple of 128 such that the double-buffered
    # working set (2 inputs x 2 buffers x C x TM x itemsize) stays well under
    # the default scoped-VMEM limit on every TPU generation.
    itemsize = max(jnp.dtype(output.dtype).itemsize, jnp.dtype(target.dtype).itemsize)
    if tm is None:
        budget = 8 * 1024 * 1024                       # bytes for pipelined inputs
        tm = budget // (2 * 2 * C * itemsize)
        tm = max(128, min(32768, (tm // 128) * 128))
    hw_pad = ((hw + 127) // 128) * 128
    tm = min(tm, hw_pad)
    need_mask = (hw % tm) != 0
    num_j = pl.cdiv(hw, tm)

    kernel = functools.partial(_dice_kernel, hw=hw, tm=tm, need_mask=need_mask)

    inter, denom = pl.pallas_call(
        kernel,
        out_shape=(
            jax.ShapeDtypeStruct((N, C, 1), jnp.float32),
            jax.ShapeDtypeStruct((N, C, 1), jnp.float32),
        ),
        grid_spec=pltpu.PrefetchScalarGridSpec(
            num_scalar_prefetch=0,
            grid=(N, num_j),
            in_specs=[
                pl.BlockSpec((None, C, tm), lambda n, j: (n, 0, j)),
                pl.BlockSpec((None, C, tm), lambda n, j: (n, 0, j)),
            ],
            out_specs=[
                pl.BlockSpec((None, C, 1), lambda n, j: (n, 0, 0)),
                pl.BlockSpec((None, C, 1), lambda n, j: (n, 0, 0)),
            ],
            scratch_shapes=[
                pltpu.VMEM((C, 128), jnp.float32),
                pltpu.VMEM((C, 128), jnp.float32),
            ],
        ),
        compiler_params=pltpu.CompilerParams(
            dimension_semantics=("parallel", "arbitrary"),
        ),
    )(out3, tgt3)

    # Tiny epilogue in plain JAX: combine per-batch partials, divide, mean.
    inter_c = inter.reshape(N, C).sum(axis=0)   # per-channel intersect
    denom_c = denom.reshape(N, C).sum(axis=0)   # per-channel denominator
    dice = inter_c / denom_c
    # NOTE: epsilon is defined but unused in the PyTorch forward -> not applied.
    return 1.0 - jnp.mean(dice)


def _dice_loss_ref(output, target):
    # pure-JAX reference mirroring the PyTorch forward
    C = output.shape[1]
    perm = (1, 0) + tuple(range(2, output.ndim))
    p = jax.nn.softmax(output.astype(jnp.float32), axis=1)
    p = jnp.transpose(p, perm).reshape(C, -1)
    t = jnp.transpose(target.astype(jnp.float32), perm).reshape(C, -1)
    intersect = (p * t).sum(-1)
    denominator = (p + t).sum(-1)
    return 1.0 - jnp.mean(intersect / denominator)


if __name__ == "__main__":
    key = jax.random.PRNGKey(0)
    k1, k2 = jax.random.split(key)
    # NCHW logits and a soft target of the same shape
    x = jax.random.normal(k1, (2, 4, 16, 16), dtype=jnp.float32)
    t = jax.nn.softmax(jax.random.normal(k2, (2, 4, 16, 16), dtype=jnp.float32), axis=1)

    loss = jax.block_until_ready(dice_loss(x, t))
    ref = jax.block_until_ready(_dice_loss_ref(x, t))

    assert jnp.allclose(loss, ref, atol=1e-5, rtol=1e-5), (loss, ref)
    print("KERNEL_OK")
</pallas_src>

<mosaic_0001>
module attributes {stable_mosaic.version = 11 : i64} {
  func.func @_dice_kernel(%arg0: i32, %arg1: i32, %arg2: memref<1x4x256xf32, #tpu.memory_space<vmem>>, %arg3: memref<1x4x256xf32, #tpu.memory_space<vmem>>, %arg4: memref<1x4x1xf32, #tpu.memory_space<vmem>>, %arg5: memref<1x4x1xf32, #tpu.memory_space<vmem>>, %arg6: memref<4x128xf32, #tpu.memory_space<vmem>>, %arg7: memref<4x128xf32, #tpu.memory_space<vmem>>) attributes {dimension_semantics = [#tpu.dimension_semantics<parallel>, #tpu.dimension_semantics<arbitrary>], iteration_bounds = array<i64: 2, 1>, scalar_prefetch = 0 : i64, scratch_operands = 2 : i64, tpu.core_type = #tpu.core_type<tc>, window_params = [{transform_indices = @transform_0, window_bounds = array<i64: 1, 4, 256>}, {transform_indices = @transform_1, window_bounds = array<i64: 1, 4, 256>}, {transform_indices = @transform_2, window_bounds = array<i64: 1, 4, 1>}, {transform_indices = @transform_3, window_bounds = array<i64: 1, 4, 1>}]} {
    %c0_i32 = arith.constant 0 : i32
    %0 = arith.cmpi eq, %arg1, %c0_i32 : i32
    %1 = arith.extui %0 : i1 to i32
    %c0_i32_0 = arith.constant 0 : i32
    %2 = arith.cmpi ne, %1, %c0_i32_0 : i32
    scf.if %2 {
      %cst_20 = arith.constant 0.000000e+00 : f32
      %33 = vector.broadcast %cst_20 : f32 to vector<4x128xf32>
      %c0_21 = arith.constant 0 : index
      %c0_22 = arith.constant 0 : index
      %34 = vector.load %arg6[%c0_21, %c0_22] : memref<4x128xf32, #tpu.memory_space<vmem>>, vector<4x128xf32>
      tpu.vector_store %arg6[%c0_21, %c0_22], %33 {strides = array<i32>} : memref<4x128xf32, #tpu.memory_space<vmem>>, vector<4x128xf32>,
      %cst_23 = arith.constant 0.000000e+00 : f32
      %35 = vector.broadcast %cst_23 : f32 to vector<4x128xf32>
      %c0_24 = arith.constant 0 : index
      %c0_25 = arith.constant 0 : index
      %36 = vector.load %arg7[%c0_24, %c0_25] : memref<4x128xf32, #tpu.memory_space<vmem>>, vector<4x128xf32>
      tpu.vector_store %arg7[%c0_24, %c0_25], %35 {strides = array<i32>} : memref<4x128xf32, #tpu.memory_space<vmem>>, vector<4x128xf32>,
    } else {
    }
    %c0 = arith.constant 0 : index
    %c0_1 = arith.constant 0 : index
    %c0_2 = arith.constant 0 : index
    %3 = vector.load %arg2[%c0, %c0_1, %c0_2] : memref<1x4x256xf32, #tpu.memory_space<vmem>>, vector<1x4x256xf32>
    %4 = vector.shape_cast %3 : vector<1x4x256xf32> to vector<4x256xf32>
    %c0_3 = arith.constant 0 : index
    %c0_4 = arith.constant 0 : index
    %c0_5 = arith.constant 0 : index
    %5 = vector.load %arg3[%c0_3, %c0_4, %c0_5] : memref<1x4x256xf32, #tpu.memory_space<vmem>>, vector<1x4x256xf32>
    %6 = vector.shape_cast %5 : vector<1x4x256xf32> to vector<4x256xf32>
    %cst = arith.constant dense<0xFF800000> : vector<256xf32>
    %7 = vector.multi_reduction <maximumf>, %4, %cst [0] : vector<4x256xf32> to vector<256xf32>
    %8 = vector.shape_cast %7 : vector<256xf32> to vector<1x256xf32>
    %9 = vector.broadcast %8 : vector<1x256xf32> to vector<4x256xf32>
    %10 = arith.subf %4, %9 : vector<4x256xf32>
    %11 = math.exp %10 : vector<4x256xf32>
    %cst_6 = arith.constant dense<0.000000e+00> : vector<256xf32>
    %12 = vector.multi_reduction <add>, %11, %cst_6 [0] : vector<4x256xf32> to vector<256xf32>
    %13 = vector.shape_cast %12 : vector<256xf32> to vector<1x256xf32>
    %cst_7 = arith.constant 1.000000e+00 : f32
    %14 = vector.broadcast %cst_7 : f32 to vector<1x256xf32>
    %15 = arith.divf %14, %13 : vector<1x256xf32>
    %16 = vector.broadcast %15 : vector<1x256xf32> to vector<4x256xf32>
    %17 = arith.mulf %11, %16 : vector<4x256xf32>
    %c0_8 = arith.constant 0 : index
    %c0_9 = arith.constant 0 : index
    %18 = vector.load %arg6[%c0_8, %c0_9] : memref<4x128xf32, #tpu.memory_space<vmem>>, vector<4x128xf32>
    %19 = arith.mulf %17, %6 : vector<4x256xf32>
    %20 = vector.shape_cast %19 : vector<4x256xf32> to vector<4x2x128xf32>
    %cst_10 = arith.constant dense<0.000000e+00> : vector<4x128xf32>
    %21 = vector.multi_reduction <add>, %20, %cst_10 [1] : vector<4x2x128xf32> to vector<4x128xf32>
    %22 = arith.addf %18, %21 : vector<4x128xf32>
    %c0_11 = arith.constant 0 : index
    %c0_12 = arith.constant 0 : index
    %23 = vector.load %arg6[%c0_11, %c0_12] : memref<4x128xf32, #tpu.memory_space<vmem>>, vector<4x128xf32>
    tpu.vector_store %arg6[%c0_11, %c0_12], %22 {strides = array<i32>} : memref<4x128xf32, #tpu.memory_space<vmem>>, vector<4x128xf32>,
    %c0_13 = arith.constant 0 : index
    %c0_14 = arith.constant 0 : index
    %24 = vector.load %arg7[%c0_13, %c0_14] : memref<4x128xf32, #tpu.memory_space<vmem>>, vector<4x128xf32>
    %25 = arith.addf %17, %6 : vector<4x256xf32>
    %26 = vector.shape_cast %25 : vector<4x256xf32> to vector<4x2x128xf32>
    %cst_15 = arith.constant dense<0.000000e+00> : vector<4x128xf32>
    %27 = vector.multi_reduction <add>, %26, %cst_15 [1] : vector<4x2x128xf32> to vector<4x128xf32>
    %28 = arith.addf %24, %27 : vector<4x128xf32>
    %c0_16 = arith.constant 0 : index
    %c0_17 = arith.constant 0 : index
    %29 = vector.load %arg7[%c0_16, %c0_17] : memref<4x128xf32, #tpu.memory_space<vmem>>, vector<4x128xf32>
    tpu.vector_store %arg7[%c0_16, %c0_17], %28 {strides = array<i32>} : memref<4x128xf32, #tpu.memory_space<vmem>>, vector<4x128xf32>,
    %c0_i32_18 = arith.constant 0 : i32
    %30 = arith.cmpi eq, %arg1, %c0_i32_18 : i32
    %31 = arith.extui %30 : i1 to i32
    %c0_i32_19 = arith.constant 0 : i32
    %32 = arith.cmpi ne, %31, %c0_i32_19 : i32
    scf.if %32 {
      %c0_20 = arith.constant 0 : index
      %c0_21 = arith.constant 0 : index
      %33 = vector.load %arg6[%c0_20, %c0_21] : memref<4x128xf32, #tpu.memory_space<vmem>>, vector<4x128xf32>
      %cst_22 = arith.constant dense<0.000000e+00> : vector<4xf32>
      %34 = vector.multi_reduction <add>, %33, %cst_22 [1] : vector<4x128xf32> to vector<4xf32>
      %35 = vector.shape_cast %34 : vector<4xf32> to vector<4x1xf32>
      %c0_23 = arith.constant 0 : index
      %c0_24 = arith.constant 0 : index
      %c0_25 = arith.constant 0 : index
      %36 = vector.load %arg4[%c0_23, %c0_24, %c0_25] : memref<1x4x1xf32, #tpu.memory_space<vmem>>, vector<1x4x1xf32>
      %37 = vector.shape_cast %36 : vector<1x4x1xf32> to vector<4x1xf32>
      %38 = vector.shape_cast %35 : vector<4x1xf32> to vector<1x4x1xf32>
      tpu.vector_store %arg4[%c0_23, %c0_24, %c0_25], %38 {strides = array<i32>} : memref<1x4x1xf32, #tpu.memory_space<vmem>>, vector<1x4x1xf32>,
      %c0_26 = arith.constant 0 : index
      %c0_27 = arith.constant 0 : index
      %39 = vector.load %arg7[%c0_26, %c0_27] : memref<4x128xf32, #tpu.memory_space<vmem>>, vector<4x128xf32>
      %cst_28 = arith.constant dense<0.000000e+00> : vector<4xf32>
      %40 = vector.multi_reduction <add>, %39, %cst_28 [1] : vector<4x128xf32> to vector<4xf32>
      %41 = vector.shape_cast %40 : vector<4xf32> to vector<4x1xf32>
      %c0_29 = arith.constant 0 : index
      %c0_30 = arith.constant 0 : index
      %c0_31 = arith.constant 0 : index
      %42 = vector.load %arg5[%c0_29, %c0_30, %c0_31] : memref<1x4x1xf32, #tpu.memory_space<vmem>>, vector<1x4x1xf32>
      %43 = vector.shape_cast %42 : vector<1x4x1xf32> to vector<4x1xf32>
      %44 = vector.shape_cast %41 : vector<4x1xf32> to vector<1x4x1xf32>
      tpu.vector_store %arg5[%c0_29, %c0_30, %c0_31], %44 {strides = array<i32>} : memref<1x4x1xf32, #tpu.memory_space<vmem>>, vector<1x4x1xf32>,
    } else {
    }
    return
  }
  func.func @transform_0(%arg0: i32, %arg1: i32) -> (i32, i32, i32) {
    %c0_i32 = arith.constant 0 : i32
    %c0_i32_0 = arith.constant 0 : i32
    return %arg0, %c0_i32, %arg1 : i32, i32, i32
  }
  func.func @transform_1(%arg0: i32, %arg1: i32) -> (i32, i32, i32) {
    %c0_i32 = arith.constant 0 : i32
    %c0_i32_0 = arith.constant 0 : i32
    return %arg0, %c0_i32, %arg1 : i32, i32, i32
  }
  func.func @transform_2(%arg0: i32, %arg1: i32) -> (i32, i32, i32) {
    %c0_i32 = arith.constant 0 : i32
    %c0_i32_0 = arith.constant 0 : i32
    %c0_i32_1 = arith.constant 0 : i32
    return %arg0, %c0_i32, %c0_i32_0 : i32, i32, i32
  }
  func.func @transform_3(%arg0: i32, %arg1: i32) -> (i32, i32, i32) {
    %c0_i32 = arith.constant 0 : i32
    %c0_i32_0 = arith.constant 0 : i32
    %c0_i32_1 = arith.constant 0 : i32
    return %arg0, %c0_i32, %c0_i32_0 : i32, i32, i32
  }
}

</mosaic_0001>

<llo_original>
// kernel: tpu_custom_call.1
$region0: #{tpu_custom_call.1}
  #allocation0 [shape = 'u32[]', space=smem, size = 0x4, offset = 0x4, fixed_abs, tag = 'smem constant byte address 0x4 - core index']
  #allocation1 [shape = 'u32[144,128]{1,0:T(1,128)}', space=vmem, size = 0x12000, scoped, tag = 'internal scratch']
  #allocation2 [shape = 'f32[4,128]{1,0:T(4,128)}', space=vmem, size = 0x800, scoped, tag = 'scratch operand']
  #allocation3 [shape = 'f32[4,128]{1,0:T(4,128)}', space=vmem, size = 0x800, scoped, tag = 'scratch operand']
  %s0 = inlined_call_operand.hbm [shape: f32[2,4,256], index: 0, kind: input, shape index: {}]
  %s1 = inlined_call_operand.hbm [shape: f32[2,4,256], index: 1, kind: input, shape index: {}]
  %s2 = inlined_call_operand.vmem [shape: f32[2,4,1], index: 2, kind: output, shape index: {0}]
  %s3 = inlined_call_operand.vmem [shape: f32[2,4,1], index: 3, kind: output, shape index: {1}]
  %4 = xla_tuple %s2, %s3
  %s5 = sld [smem:[#allocation0]]
  $region65: #{tpu_custom_call.1} parent=0
    _
  %s7 = ssub.s32 1, %s5
  %s8 = scalar_select 0, %s7, %s5
  $region1: #{tpu_custom_call.1} parent=0
    #allocation4 [shape = 'u8[8192]{0}', space=vmem, size = 0x2000, scoped, tag = 'input window, operand 0']
    #allocation5 [shape = 's32[2]{0}', space=sflag, size = 0x8, scoped, tag = 'scoped memory for tpu_custom_call.1']
    #allocation6 [shape = 'u8[8192]{0}', space=vmem, size = 0x2000, scoped, tag = 'input window, operand 1']
    #allocation7 [shape = 's32[2]{0}', space=sflag, size = 0x8, scoped, tag = 'scoped memory for tpu_custom_call.1']
    %9 = vsyncpa [#allocation5], 0
    %s10 = scalar_lea.sflag [#allocation5], 1
    %11 = vsyncpa %s10, 0
    %12 = vsyncpa [#allocation7], 0
    %s13 = scalar_lea.sflag [#allocation7], 1
    %14 = vsyncpa %s13, 0
    loop: start=0, step=1, limit=4
    $region2: #{tpu_custom_call.1} parent=1 // loop_pre_header
      _
    $region3: #{tpu_custom_call.1} parent=1 // loop_header
      %s16 = sphi 0, %s20
      %p17 = scmp.ge.s32.totalorder %s16, 4
      %s23 = sphi 0, %s35
      %s24 = sphi 0, %s31
      %s25 = sphi 0, %s23
      %s26 = sphi 0, %s24
      %s27 = sphi 0, %s25
      %s28 = sphi 0, %s26
      %s40 = sphi 0, %s42
      %s43 = sphi 0, %s40
      %s44 = sphi 0, %s43
      %s60 = sphi 0, %s44
      %s68 = sphi 0, %s70
      %s71 = sphi 0, %s68
      %s72 = sphi 0, %s71
      %s88 = sphi 0, %s72
      %s94 = sphi 0, %s96
      %s97 = sphi 0, %s94
      %s98 = sphi 0, %s97
      %s114 = sphi 0, %s98
      %s120 = sphi 0, %s122
      %s123 = sphi 0, %s120
      %s124 = sphi 0, %s123
      %s140 = sphi 0, %s124
    $region4: #{tpu_custom_call.1} parent=1 // loop_header_branch
      %19 = sbr.rel (%p17) target = $region8
    $region5: #{tpu_custom_call.1} parent=1 // loop_body
      %s21 = ssub.s32 %s16, 1
      %s22 = ssub.s32 %s16, 2
      %s29 = sadd.s32 1, %s24
      %p30 = scmp.ge.s32.totalorder %s29, 1
      %s31 = scalar_select %p30, 0, %s29
      %s32 = sadd.s32 1, %s23
      %s33 = scalar_select %p30, %s32, %s23
      %p34 = scmp.ge.s32.totalorder %s33, 2
      %s35 = scalar_select %p34, 0, %s33
      %s36 = ssub.s32 %s23, %s35
      %s37 = ssub.s32 %s24, %s31
      %s38 = sor.u32 %s36, %s37
      %p39 = scmp.eq.s32.totalorder %s38, 0
      %s41 = sadd.s32 %s40, 1
      %s42 = scalar_select %p39, %s40, %s41
      %p45 = pneg %p39
      %p46 = scmp.eq.s32.totalorder %s16, 1
      %p47 = por %p45, %p46
      %p48 = scmp.ne.s32.totalorder %s40, %s43
      %p49 = scmp.eq.s32.totalorder %s16, 0
      %p50 = por %p48, %p49
      %p51 = scmp.ne.s32.totalorder %s40, %s43
      %p52 = scmp.eq.s32.totalorder %s21, 1
      %p53 = por %p51, %p52
      %p54 = scmp.ne.s32.totalorder %s43, %s44
      %p55 = scmp.eq.s32.totalorder %s21, 0
      %p56 = por %p54, %p55
      %p57 = scmp.ne.s32.totalorder %s43, %s44
      %p58 = scmp.eq.s32.totalorder %s22, 1
      %p59 = por %p57, %p58
      %p61 = scmp.ne.s32.totalorder %s44, %s60
      %p62 = scmp.eq.s32.totalorder %s22, 0
      %p63 = por %p61, %p62
      %s64 = ssub.s32 %s23, %s35
      %s65 = ssub.s32 %s24, %s31
      %s66 = sor.u32 %s64, %s65
      %p67 = scmp.eq.s32.totalorder %s66, 0
      %s69 = sadd.s32 %s68, 1
      %s70 = scalar_select %p67, %s68, %s69
      %p73 = pneg %p67
      %p74 = scmp.eq.s32.totalorder %s16, 1
      %p75 = por %p73, %p74
      %p76 = scmp.ne.s32.totalorder %s68, %s71
      %p77 = scmp.eq.s32.totalorder %s16, 0
      %p78 = por %p76, %p77
      %p79 = scmp.ne.s32.totalorder %s68, %s71
      %p80 = scmp.eq.s32.totalorder %s21, 1
      %p81 = por %p79, %p80
      %p82 = scmp.ne.s32.totalorder %s71, %s72
      %p83 = scmp.eq.s32.totalorder %s21, 0
      %p84 = por %p82, %p83
      %p85 = scmp.ne.s32.totalorder %s71, %s72
      %p86 = scmp.eq.s32.totalorder %s22, 1
      %p87 = por %p85, %p86
      %p89 = scmp.ne.s32.totalorder %s72, %s88
      %p90 = scmp.eq.s32.totalorder %s22, 0
      %p91 = por %p89, %p90
      %s92 = ssub.s32 %s23, %s35
      %p93 = scmp.eq.s32.totalorder %s92, 0
      %s95 = sadd.s32 %s94, 1
      %s96 = scalar_select %p93, %s94, %s95
      %p99 = pneg %p93
      %p100 = scmp.eq.s32.totalorder %s16, 1
      %p101 = por %p99, %p100
      %p102 = scmp.ne.s32.totalorder %s94, %s97
      %p103 = scmp.eq.s32.totalorder %s16, 0
      %p104 = por %p102, %p103
      %p105 = scmp.ne.s32.totalorder %s94, %s97
      %p106 = scmp.eq.s32.totalorder %s21, 1
      %p107 = por %p105, %p106
      %p108 = scmp.ne.s32.totalorder %s97, %s98
      %p109 = scmp.eq.s32.totalorder %s21, 0
      %p110 = por %p108, %p109
      %p111 = scmp.ne.s32.totalorder %s97, %s98
      %p112 = scmp.eq.s32.totalorder %s22, 1
      %p113 = por %p111, %p112
      %p115 = scmp.ne.s32.totalorder %s98, %s114
      %p116 = scmp.eq.s32.totalorder %s22, 0
      %p117 = por %p115, %p116
      %s118 = ssub.s32 %s23, %s35
      %p119 = scmp.eq.s32.totalorder %s118, 0
      %s121 = sadd.s32 %s120, 1
      %s122 = scalar_select %p119, %s120, %s121
      %p125 = pneg %p119
      %p126 = scmp.eq.s32.totalorder %s16, 1
      %p127 = por %p125, %p126
      %p128 = scmp.ne.s32.totalorder %s120, %s123
      %p129 = scmp.eq.s32.totalorder %s16, 0
      %p130 = por %p128, %p129
      %p131 = scmp.ne.s32.totalorder %s120, %s123
      %p132 = scmp.eq.s32.totalorder %s21, 1
      %p133 = por %p131, %p132
      %p134 = scmp.ne.s32.totalorder %s123, %s124
      %p135 = scmp.eq.s32.totalorder %s21, 0
      %p136 = por %p134, %p135
      %p137 = scmp.ne.s32.totalorder %s123, %s124
      %p138 = scmp.eq.s32.totalorder %s22, 1
      %p139 = por %p137, %p138
      %p141 = scmp.ne.s32.totalorder %s124, %s140
      %p142 = scmp.eq.s32.totalorder %s22, 0
      %p143 = por %p141, %p142
      %p144 = scmp.le.s32.totalorder 1, %s16
      %p145 = scmp.lt.s32.totalorder %s16, 3
      %p146 = pnand %p144, %p145
      %p147 = pneg %p146
      // Predicated region
      $region9: #{tpu_custom_call.1} parent=5 // pred_check
        _
      $region10: #{tpu_custom_call.1} parent=5 // pred_check_branch
        %149 = sbr.rel (%p146) target = $region12
      $region11: #{tpu_custom_call.1} parent=5 // pred_region
        %s150 = ssub.s32 %s16, 1
      $region12: #{tpu_custom_call.1} parent=5 // pred_fallthru
        _
      %p151 = scmp.lt.s32.totalorder %s16, 2
      // Predicated region
      $region13: #{tpu_custom_call.1} parent=5 // pred_check
        %p152 = pneg %p151
      $region14: #{tpu_custom_call.1} parent=5 // pred_check_branch
        %154 = sbr.rel (%p152) target = $region16
      $region15: #{tpu_custom_call.1} parent=5 // pred_region
        // Predicated region
        $region17: #{tpu_custom_call.1} parent=15 // pred_check
          %p155 = pneg %p50
        $region18: #{tpu_custom_call.1} parent=15 // pred_check_branch
          %157 = sbr.rel (%p155) target = $region20
        $region19: #{tpu_custom_call.1} parent=15 // pred_region
          %s158 = sand.u32 %s40, 1
          %s159 = scalar_lea.sflag [#allocation5], %s158
          %s160 = sand.u32 %s40, 1
          %s161 = smul.addr %s160, 8
          %s162 = scalar_lea.vmem [#allocation4], %s161
          %s163 = smul.u32 2, %s24
          %s165 = ssub.s32 128, 128
          %166 = vsyncadd %s159, %s165
          %s167 = smul.addr %s23, 2
          %s168 = sadd.s32 %s163, %s167
          %s169 = smul.addr %s168, 64
          %s170 = scalar_lea.hbm %s0, %s169
          %s172 = sshll.u32 %s162, 4
          %s173 = int_to_ptr.vmem [resolvable:$true] %s172
          %175 = dma.hbm_to_vmem [thread:$0]  %s170, 128, %s173, %s159
        $region20: #{tpu_custom_call.1} parent=15 // pred_fallthru
          _
        // Predicated region
        $region21: #{tpu_custom_call.1} parent=15 // pred_check
          %p176 = pneg %p78
        $region22: #{tpu_custom_call.1} parent=15 // pred_check_branch
          %178 = sbr.rel (%p176) target = $region24
        $region23: #{tpu_custom_call.1} parent=15 // pred_region
          %s179 = sand.u32 %s68, 1
          %s180 = scalar_lea.sflag [#allocation7], %s179
          %s181 = sand.u32 %s68, 1
          %s182 = smul.addr %s181, 8
          %s183 = scalar_lea.vmem [#allocation6], %s182
          %s184 = smul.u32 2, %s24
          %s186 = ssub.s32 128, 128
          %187 = vsyncadd %s180, %s186
          %s188 = smul.addr %s23, 2
          %s189 = sadd.s32 %s184, %s188
          %s190 = smul.addr %s189, 64
          %s191 = scalar_lea.hbm %s1, %s190
          %s193 = sshll.u32 %s183, 4
          %s194 = int_to_ptr.vmem [resolvable:$true] %s193
          %196 = dma.hbm_to_vmem [thread:$0]  %s191, 128, %s194, %s180
        $region24: #{tpu_custom_call.1} parent=15 // pred_fallthru
          _
      $region16: #{tpu_custom_call.1} parent=5 // pred_fallthru
        _
      %p197 = scmp.le.s32.totalorder 1, %s16
      %p198 = scmp.lt.s32.totalorder %s16, 3
      %p199 = pnand %p197, %p198
      %p200 = pneg %p199
      // Predicated region
      $region25: #{tpu_custom_call.1} parent=5 // pred_check
        _
      $region26: #{tpu_custom_call.1} parent=5 // pred_check_branch
        %202 = sbr.rel (%p199) target = $region28
      $region27: #{tpu_custom_call.1} parent=5 // pred_region
        %s203 = ssub.s32 %s16, 1
        %s204 = sand.u32 %s43, 1
        %s205 = scalar_lea.sflag [#allocation5], %s204
        %s206 = sand.u32 %s43, 1
        %s207 = smul.addr %s206, 8
        %s208 = scalar_lea.vmem [#allocation4], %s207
        // Predicated region
        $region29: #{tpu_custom_call.1} parent=27 // pred_check
          %p209 = pneg %p56
        $region30: #{tpu_custom_call.1} parent=27 // pred_check_branch
          %211 = sbr.rel (%p209) target = $region32
        $region31: #{tpu_custom_call.1} parent=27 // pred_region
          %212 = dma.done %s205, 128
        $region32: #{tpu_custom_call.1} parent=27 // pred_fallthru
          _
        %s213 = sand.u32 %s71, 1
        %s214 = scalar_lea.sflag [#allocation7], %s213
        %s215 = sand.u32 %s71, 1
        %s216 = smul.addr %s215, 8
        %s217 = scalar_lea.vmem [#allocation6], %s216
        // Predicated region
        $region33: #{tpu_custom_call.1} parent=27 // pred_check
          %p218 = pneg %p84
        $region34: #{tpu_custom_call.1} parent=27 // pred_check_branch
          %220 = sbr.rel (%p218) target = $region36
        $region35: #{tpu_custom_call.1} parent=27 // pred_region
          %221 = dma.done %s214, 128
        $region36: #{tpu_custom_call.1} parent=27 // pred_fallthru
          _
        %s222 = sand.u32 %s43, 1
        %s223 = scalar_lea.sflag [#allocation5], %s222
        %s224 = sand.u32 %s43, 1
        %s225 = smul.addr %s224, 8
        %s226 = scalar_lea.vmem [#allocation4], %s225
        %p227 = pneg %p56
        %p228 = pneg %p53
        %s229 = sand.u32 %s71, 1
        %s230 = scalar_lea.sflag [#allocation7], %s229
        %s231 = sand.u32 %s71, 1
        %s232 = smul.addr %s231, 8
        %s233 = scalar_lea.vmem [#allocation6], %s232
        %p234 = pneg %p84
        %p235 = pneg %p81
        %p236 = pneg %p110
        %p237 = pneg %p107
        %p238 = scmp.lt.s32.totalorder %s25, 1
        %s239 = scalar_select %p238, %s25, 1
        %s240 = smul.addr %s239, 4
        %s241 = scalar_lea.vmem %s2, %s240
        %p242 = pneg %p136
        %p243 = pneg %p133
        %p244 = scmp.lt.s32.totalorder %s25, 1
        %s245 = scalar_select %p244, %s25, 1
        %s246 = smul.addr %s245, 4
        %s247 = scalar_lea.vmem %s3, %s246
        %s248 = smul.u32 2, %s26
        %s249 = smul.u32 2, %s26
        %p250 = scmp.lt.s32.totalorder %s25, 1
        %s251 = scalar_select %p250, %s25, 1
        %s252 = smul.addr %s251, 4
        %s253 = scalar_lea.vmem %s2, %s252
        %p254 = scmp.lt.s32.totalorder %s25, 1
        %s255 = scalar_select %p254, %s25, 1
        %s256 = smul.addr %s255, 4
        %s257 = scalar_lea.vmem %s3, %s256
        %p258 = scmp.eq.s32.totalorder %s26, 0
        // Predicated region
        $region37: #{tpu_custom_call.1} parent=27 // pred_check
          %p259 = pneg %p258
        $region38: #{tpu_custom_call.1} parent=27 // pred_check_branch
          %261 = sbr.rel (%p259) target = $region40
        $region39: #{tpu_custom_call.1} parent=27 // pred_region
          %262 = vst [vmem:[#allocation2] sm:$0xf] 0.0
          %263 = vst [vmem:[#allocation3] sm:$0xf] 0.0
        $region40: #{tpu_custom_call.1} parent=27 // pred_fallthru
          _
        %v264 = vld [vmem:[%s208] sm:$0xff]
        %v265 = vld [vmem:[%s217] sm:$0xff]
        %v267 = vcombine.high %v264, %v264
        %vm269 = vcmask 1043456
        %v270 = vsel %vm269, %v264, -inf
        %v271 = vrot.slane %v270, 4
        %v272 = vmax.f32 %v270, %v271
        %v273 = vrot.slane %v272, 2
        %v274 = vmax.f32 %v272, %v273
        %v275 = vrot.slane %v274, 1
        %v276 = vmax.f32 %v274, %v275
        %v277 = vsel %vm269, %v267, -inf
        %v278 = vrot.slane %v277, 4
        %v279 = vmax.f32 %v277, %v278
        %v280 = vrot.slane %v279, 2
        %v281 = vmax.f32 %v279, %v280
        %v282 = vrot.slane %v281, 1
        %v283 = vmax.f32 %v281, %v282
        %v286 = vcombine.low %v276, %v283
        %v288 = vsub.f32 %v264, %v286
        %v289 = vmul.f32 %v288, 1.442695
        %v290 = vpow.pop %v289
        %v292 = vcombine.high %v290, %v290
        %v294 = vsel %vm269, %v290, 0.0
        %v295 = vrot.slane %v294, 4
        %v296 = vadd.f32 %v294, %v295
        %v297 = vrot.slane %v296, 2
        %v298 = vadd.f32 %v296, %v297
        %v299 = vrot.slane %v298, 1
        %v300 = vadd.f32 %v298, %v299
        %v301 = vsel %vm269, %v292, 0.0
        %v302 = vrot.slane %v301, 4
        %v303 = vadd.f32 %v301, %v302
        %v304 = vrot.slane %v303, 2
        %v305 = vadd.f32 %v303, %v304
        %v306 = vrot.slane %v305, 1
        %v307 = vadd.f32 %v305, %v306
        %v308 = vrcp.pop %v300
        %v309 = vmul.f32 1.0, %v308
        %v310 = vrcp.pop %v307
        %v311 = vmul.f32 1.0, %v310
        %v314 = vcombine.low %v309, %v311
        %v316 = vmul.f32 %v290, %v314
        %v317 = vld [vmem:[#allocation2] sm:$0xf]
        %v318 = vmul.f32 %v316, %v265
        %v320 = vrot.slane %v318, 4
        %v322 = vunpack.c.l.s4 1983009808
        %v323 = vunpack.c.0.s8 %v322
        %v324 = vlaneseq
        %v325 = vshrl.u32 %v324, 7
        %v326 = vsub.s32 %v323, %v325
        %v327 = vrot.slane %v318, %v326
        %v330 = vunpack.c.l.s4 1983009808
        %v331 = vunpack.c.0.s8 %v330
        %v332 = vlaneseq
        %v333 = vshrl.u32 %v332, 7
        %v334 = vsub.s32 %v331, %v333
        %v335 = vrot.slane %v320, %v334
        %v336 = vcombine.low %v327, %v335
        %v337 = vcombine.high %v327, %v335
        %v339 = vunpack.c.l.s4 1934713408
        %v340 = vunpack.c.0.s8 %v339
        %v341 = vlaneseq
        %v342 = vshrl.u32 %v341, 7
        %v343 = vsub.s32 %v340, %v342
        %v344 = vrot.slane %v336, %v343
        %v346 = vunpack.c.l.s4 1934713408
        %v347 = vunpack.c.0.s8 %v346
        %v348 = vlaneseq
        %v349 = vshrl.u32 %v348, 7
        %v350 = vsub.s32 %v347, %v349
        %v351 = vrot.slane %v337, %v350
        %v352 = vcombine.high %v344, 0.0
        %v353 = vcombine.high %v351, 0.0
        %vm354 = vcmask 1041408
        %v355 = vsel %vm354, %v344, 0.0
        %v356 = vrot.slane %v355, 4
        %v357 = vadd.f32 %v355, %v356
        %v358 = vrot.slane %v357, 2
        %v359 = vadd.f32 %v357, %v358
        %v360 = vrot.slane %v359, 1
        %v361 = vadd.f32 %v359, %v360
        %v362 = vsel %vm354, %v352, 0.0
        %v363 = vrot.slane %v362, 4
        %v364 = vadd.f32 %v362, %v363
        %v365 = vrot.slane %v364, 2
        %v366 = vadd.f32 %v364, %v365
        %v367 = vrot.slane %v366, 1
        %v368 = vadd.f32 %v366, %v367
        %v369 = vsel %vm354, %v351, 0.0
        %v370 = vrot.slane %v369, 4
        %v371 = vadd.f32 %v369, %v370
        %v372 = vrot.slane %v371, 2
        %v373 = vadd.f32 %v371, %v372
        %v374 = vrot.slane %v373, 1
        %v375 = vadd.f32 %v373, %v374
        %v376 = vsel %vm354, %v353, 0.0
        %v377 = vrot.slane %v376, 4
        %v378 = vadd.f32 %v376, %v377
        %v379 = vrot.slane %v378, 2
        %v380 = vadd.f32 %v378, %v379
        %v381 = vrot.slane %v380, 1
        %v382 = vadd.f32 %v380, %v381
        %vm387 = vcmask 1041409
        %v388 = vsel %vm387, %v368, %v361
        %vm389 = vcmask 1042434
        %v390 = vsel %vm389, %v375, %v388
        %vm391 = vcmask 1043459
        %v392 = vsel %vm391, %v382, %v390
        %v394 = vadd.f32 %v317, %v392
        %395 = vst [vmem:[#allocation2] sm:$0xf] %v394
        %v396 = vld [vmem:[#allocation3] sm:$0xf]
        %v397 = vadd.f32 %v316, %v265
        %v399 = vrot.slane %v397, 4
        %v401 = vunpack.c.l.s4 1983009808
        %v402 = vunpack.c.0.s8 %v401
        %v403 = vlaneseq
        %v404 = vshrl.u32 %v403, 7
        %v405 = vsub.s32 %v402, %v404
        %v406 = vrot.slane %v397, %v405
        %v409 = vunpack.c.l.s4 1983009808
        %v410 = vunpack.c.0.s8 %v409
        %v411 = vlaneseq
        %v412 = vshrl.u32 %v411, 7
        %v413 = vsub.s32 %v410, %v412
        %v414 = vrot.slane %v399, %v413
        %v415 = vcombine.low %v406, %v414
        %v416 = vcombine.high %v406, %v414
        %v418 = vunpack.c.l.s4 1934713408
        %v419 = vunpack.c.0.s8 %v418
        %v420 = vlaneseq
        %v421 = vshrl.u32 %v420, 7
        %v422 = vsub.s32 %v419, %v421
        %v423 = vrot.slane %v415, %v422
        %v425 = vunpack.c.l.s4 1934713408
        %v426 = vunpack.c.0.s8 %v425
        %v427 = vlaneseq
        %v428 = vshrl.u32 %v427, 7
        %v429 = vsub.s32 %v426, %v428
        %v430 = vrot.slane %v416, %v429
        %v431 = vcombine.high %v423, 0.0
        %v432 = vcombine.high %v430, 0.0
        %v433 = vsel %vm354, %v423, 0.0
        %v434 = vrot.slane %v433, 4
        %v435 = vadd.f32 %v433, %v434
        %v436 = vrot.slane %v435, 2
        %v437 = vadd.f32 %v435, %v436
        %v438 = vrot.slane %v437, 1
        %v439 = vadd.f32 %v437, %v438
        %v440 = vsel %vm354, %v431, 0.0
        %v441 = vrot.slane %v440, 4
        %v442 = vadd.f32 %v440, %v441
        %v443 = vrot.slane %v442, 2
        %v444 = vadd.f32 %v442, %v443
        %v445 = vrot.slane %v444, 1
        %v446 = vadd.f32 %v444, %v445
        %v447 = vsel %vm354, %v430, 0.0
        %v448 = vrot.slane %v447, 4
        %v449 = vadd.f32 %v447, %v448
        %v450 = vrot.slane %v449, 2
        %v451 = vadd.f32 %v449, %v450
        %v452 = vrot.slane %v451, 1
        %v453 = vadd.f32 %v451, %v452
        %v454 = vsel %vm354, %v432, 0.0
        %v455 = vrot.slane %v454, 4
        %v456 = vadd.f32 %v454, %v455
        %v457 = vrot.slane %v456, 2
        %v458 = vadd.f32 %v456, %v457
        %v459 = vrot.slane %v458, 1
        %v460 = vadd.f32 %v458, %v459
        %v465 = vsel %vm387, %v446, %v439
        %v466 = vsel %vm389, %v453, %v465
        %v467 = vsel %vm391, %v460, %v466
        %v469 = vadd.f32 %v396, %v467
        %470 = vst [vmem:[#allocation3] sm:$0xf] %v469
        // Predicated region
        $region41: #{tpu_custom_call.1} parent=27 // pred_check
          %p471 = pneg %p258
        $region42: #{tpu_custom_call.1} parent=27 // pred_check_branch
          %473 = sbr.rel (%p471) target = $region44
        $region43: #{tpu_custom_call.1} parent=27 // pred_region
          %v474 = vld [vmem:[#allocation2] sm:$0xf]
          %v475 = vsel %vm269, %v474, 0.0
          %476 = vadd.xlane.f32.xlu0 %v475
          %v477 = vpop.xlane.xlu0 %476
          %vm478 = vcmask 3072
          %479 = vst.msk [vmem:[%s253] sm:$0xf] %vm478, %v477
          %v480 = vld [vmem:[#allocation3] sm:$0xf]
          %v481 = vsel %vm269, %v480, 0.0
          %482 = vadd.xlane.f32.xlu0 %v481
          %v483 = vpop.xlane.xlu0 %482
          %484 = vst.msk [vmem:[%s257] sm:$0xf] %vm478, %v483
        $region44: #{tpu_custom_call.1} parent=27 // pred_fallthru
          _
        %p485 = scmp.lt.s32.totalorder %s25, 1
        %s486 = scalar_select %p485, %s25, 1
        %s487 = smul.addr %s486, 4
        %s488 = scalar_lea.vmem %s2, %s487
        %p489 = scmp.lt.s32.totalorder %s25, 1
        %s490 = scalar_select %p489, %s25, 1
        %s491 = smul.addr %s490, 4
        %s492 = scalar_lea.vmem %s3, %s491
        // Predicated region
        $region45: #{tpu_custom_call.1} parent=27 // pred_check
          %p493 = pneg %p107
        $region46: #{tpu_custom_call.1} parent=27 // pred_check_branch
          %495 = sbr.rel (%p493) target = $region48
        $region47: #{tpu_custom_call.1} parent=27 // pred_region
          _
        $region48: #{tpu_custom_call.1} parent=27 // pred_fallthru
          _
        // Predicated region
        $region49: #{tpu_custom_call.1} parent=27 // pred_check
          %p496 = pneg %p133
        $region50: #{tpu_custom_call.1} parent=27 // pred_check_branch
          %498 = sbr.rel (%p496) target = $region52
        $region51: #{tpu_custom_call.1} parent=27 // pred_region
          _
        $region52: #{tpu_custom_call.1} parent=27 // pred_fallthru
          _
      $region28: #{tpu_custom_call.1} parent=5 // pred_fallthru
        _
      %p499 = scmp.le.s32.totalorder 2, %s16
      // Predicated region
      $region53: #{tpu_custom_call.1} parent=5 // pred_check
        %p500 = pneg %p499
      $region54: #{tpu_custom_call.1} parent=5 // pred_check_branch
        %502 = sbr.rel (%p500) target = $region56
      $region55: #{tpu_custom_call.1} parent=5 // pred_region
        %s503 = ssub.s32 %s16, 2
        // Predicated region
        $region57: #{tpu_custom_call.1} parent=55 // pred_check
          %p504 = pneg %p113
        $region58: #{tpu_custom_call.1} parent=55 // pred_check_branch
          %506 = sbr.rel (%p504) target = $region60
        $region59: #{tpu_custom_call.1} parent=55 // pred_region
          %p507 = scmp.lt.s32.totalorder %s27, 1
          %s508 = scalar_select %p507, %s27, 1
          %s509 = smul.addr %s508, 4
          %s510 = scalar_lea.vmem %s2, %s509
        $region60: #{tpu_custom_call.1} parent=55 // pred_fallthru
          _
        // Predicated region
        $region61: #{tpu_custom_call.1} parent=55 // pred_check
          %p511 = pneg %p139
        $region62: #{tpu_custom_call.1} parent=55 // pred_check_branch
          %513 = sbr.rel (%p511) target = $region64
        $region63: #{tpu_custom_call.1} parent=55 // pred_region
          %p514 = scmp.lt.s32.totalorder %s27, 1
          %s515 = scalar_select %p514, %s27, 1
          %s516 = smul.addr %s515, 4
          %s517 = scalar_lea.vmem %s3, %s516
        $region64: #{tpu_custom_call.1} parent=55 // pred_fallthru
          _
      $region56: #{tpu_custom_call.1} parent=5 // pred_fallthru
        _
    $region6: #{tpu_custom_call.1} parent=1 // loop_footer
      %s20 = sadd.s32 1, %s16
    $region7: #{tpu_custom_call.1} parent=1 // loop_footer_branch
      %15 = sbr.rel target = $region3
    $region8: #{tpu_custom_call.1} parent=1 // loop_exit
      _
    %518 = vsyncpa [#allocation5], 1
    %s519 = scalar_lea.sflag [#allocation5], 1
    %520 = vsyncpa %s519, 1
    %521 = vsyncpa [#allocation7], 1
    %s522 = scalar_lea.sflag [#allocation7], 1
    %523 = vsyncpa %s522, 1

</llo_original>
